<compile_context>
chip_gen: v7x
topology: tpu7x:2x2x1
jax: 0.10.0
libtpu: 0.0.40
codegen_flags: <defaults>
</compile_context>

<pallas_src>
import functools

import jax
import jax.numpy as jnp
from jax import lax
from jax.experimental import pallas as pl
from jax.experimental.pallas import tpu as pltpu

_NEG_BIG = -1e30  # "minus infinity" that stays NaN-free under subtraction


def _cdiv(a: int, b: int) -> int:
    return -(-a // b)


def _entropy_kernel(x_ref, o_ref, m_ref, s_ref, *, n_valid: int, lambd: float):
    c = pl.program_id(0)          # parallel shard (megacore on v7x)
    k = pl.program_id(1)          # reduction step over row tiles
    nk = pl.num_programs(1)

    @pl.when(k == 0)
    def _():
        m_ref[...] = jnp.full_like(m_ref, _NEG_BIG)
        s_ref[...] = jnp.zeros_like(s_ref)

    tr, lane = x_ref.shape
    x = x_ref[...].astype(jnp.float32)
    y = jnp.float32(-lambd) * x

    # Mask padded tail elements (flat index >= n_valid) with a huge negative
    # value: exp() of it underflows to 0, so padding contributes nothing.
    row0 = (c * nk + k) * tr
    row_ids = lax.broadcasted_iota(jnp.int32, (tr, lane), 0) + row0
    col_ids = lax.broadcasted_iota(jnp.int32, (tr, lane), 1)
    valid = (row_ids * lane + col_ids) < n_valid
    y = jnp.where(valid, y, jnp.float32(_NEG_BIG))

    # Online log-sum-exp with (8,128) vector accumulators (no XLU in the loop).
    y3 = y.reshape(-1, 8, lane)                       # (tr//8, 8, 128)
    tile_m = jnp.max(y3, axis=0)                      # (8, 128)
    m_old = m_ref[...]
    m_new = jnp.maximum(m_old, tile_m)
    s_ref[...] = s_ref[...] * jnp.exp(m_old - m_new) + jnp.sum(
        jnp.exp(y3 - m_new[None, :, :]), axis=0)
    m_ref[...] = m_new

    @pl.when(k == nk - 1)
    def _():
        o_ref[0, 0, :, :] = m_ref[...]
        o_ref[0, 1, :, :] = s_ref[...]


def entropy(portfolio_value: jax.Array, lambd: float,
            *, tile_rows: int = 512, num_shards: int = 2) -> jax.Array:
    """-1/lambd * log(mean(exp(-lambd * x))), computed in a Pallas TPU kernel."""
    assert lambd != 0.0
    x = portfolio_value                       # keep native dtype; cast in-kernel
    n_total = int(x.size)
    assert n_total >= 1

    lane = 128
    rows = _cdiv(n_total, lane)
    rows_per_shard = _cdiv(rows, num_shards)
    rows_per_shard = _cdiv(rows_per_shard, 8) * 8      # sublane multiple
    tr = min(tile_rows, rows_per_shard)                # tr is a multiple of 8
    steps = _cdiv(rows_per_shard, tr)
    rows_per_shard = steps * tr
    total_rows = num_shards * rows_per_shard

    flat = x.reshape(-1)
    pad = total_rows * lane - n_total
    if pad:
        flat = jnp.pad(flat, (0, pad))                 # pad value is masked away
    x2d = flat.reshape(total_rows, lane)

    kernel = functools.partial(_entropy_kernel, n_valid=n_total, lambd=float(lambd))
    partials = pl.pallas_call(
        kernel,
        out_shape=jax.ShapeDtypeStruct((num_shards, 2, 8, lane), jnp.float32),
        grid_spec=pltpu.PrefetchScalarGridSpec(
            num_scalar_prefetch=0,
            grid=(num_shards, steps),
            in_specs=[pl.BlockSpec((tr, lane), lambda c, k: (c * steps + k, 0))],
            out_specs=pl.BlockSpec((1, 2, 8, lane), lambda c, k: (c, 0, 0, 0)),
            scratch_shapes=[pltpu.VMEM((8, lane), jnp.float32),
                            pltpu.VMEM((8, lane), jnp.float32)],
        ),
        compiler_params=pltpu.CompilerParams(
            dimension_semantics=("parallel", "arbitrary"),
        ),
        cost_estimate=pl.CostEstimate(
            flops=5 * n_total,
            transcendentals=n_total,
            bytes_accessed=n_total * x.dtype.itemsize,
        ),
    )(x2d)

    # Combine per-shard / per-lane partials (trivial scalar math in JAX).
    m_vec = partials[:, 0]                    # (num_shards, 8, 128)
    s_vec = partials[:, 1]
    m = jnp.max(m_vec)
    s = jnp.sum(s_vec * jnp.exp(m_vec - m))
    # log(mean(exp(-lambd*x))) = m + log(s) - log(N)
    return (-1.0 / lambd) * (m + jnp.log(s) - jnp.log(jnp.float32(n_total)))


if __name__ == "__main__":
    key = jax.random.PRNGKey(0)
    lambd = 1.3
    # Small, deliberately non-(8,128)-aligned portfolio-value tensor to
    # exercise the padding / masking path.
    portfolio_value = jax.random.normal(key, (3, 333), dtype=jnp.float32) * 2.0 + 0.5

    result = entropy(portfolio_value, lambd)
    result = jax.block_until_ready(result)

    # Silent correctness check against the plain-JAX reference.
    ref = (-1.0 / lambd) * jnp.log(jnp.mean(jnp.exp(-lambd * portfolio_value)))
    assert jnp.allclose(result, ref, rtol=1e-4, atol=1e-5), (result, ref)

    print("KERNEL_OK")
</pallas_src>

<mosaic_0001>
module attributes {stable_mosaic.version = 11 : i64} {
  func.func @_entropy_kernel(%arg0: i32, %arg1: i32, %arg2: memref<8x128xf32, #tpu.memory_space<vmem>>, %arg3: memref<1x2x8x128xf32, #tpu.memory_space<vmem>>, %arg4: memref<8x128xf32, #tpu.memory_space<vmem>>, %arg5: memref<8x128xf32, #tpu.memory_space<vmem>>) attributes {dimension_semantics = [#tpu.dimension_semantics<parallel>, #tpu.dimension_semantics<arbitrary>], iteration_bounds = array<i64: 2, 1>, scalar_prefetch = 0 : i64, scratch_operands = 2 : i64, tpu.core_type = #tpu.core_type<tc>, window_params = [{transform_indices = @transform_0, window_bounds = array<i64: 8, 128>}, {transform_indices = @transform_1, window_bounds = array<i64: 1, 2, 8, 128>}]} {
    %c0_i32 = arith.constant 0 : i32
    %0 = arith.cmpi eq, %arg1, %c0_i32 : i32
    %1 = arith.extui %0 : i1 to i32
    %c0_i32_0 = arith.constant 0 : i32
    %2 = arith.cmpi ne, %1, %c0_i32_0 : i32
    scf.if %2 {
      %cst_15 = arith.constant -1.000000e+30 : f32
      %38 = vector.broadcast %cst_15 : f32 to vector<8x128xf32>
      %c0_16 = arith.constant 0 : index
      %c0_17 = arith.constant 0 : index
      %39 = vector.load %arg4[%c0_16, %c0_17] : memref<8x128xf32, #tpu.memory_space<vmem>>, vector<8x128xf32>
      tpu.vector_store %arg4[%c0_16, %c0_17], %38 {strides = array<i32>} : memref<8x128xf32, #tpu.memory_space<vmem>>, vector<8x128xf32>,
      %cst_18 = arith.constant 0.000000e+00 : f32
      %40 = vector.broadcast %cst_18 : f32 to vector<8x128xf32>
      %c0_19 = arith.constant 0 : index
      %c0_20 = arith.constant 0 : index
      %41 = vector.load %arg5[%c0_19, %c0_20] : memref<8x128xf32, #tpu.memory_space<vmem>>, vector<8x128xf32>
      tpu.vector_store %arg5[%c0_19, %c0_20], %40 {strides = array<i32>} : memref<8x128xf32, #tpu.memory_space<vmem>>, vector<8x128xf32>,
    } else {
    }
    %c0 = arith.constant 0 : index
    %c0_1 = arith.constant 0 : index
    %3 = vector.load %arg2[%c0, %c0_1] : memref<8x128xf32, #tpu.memory_space<vmem>>, vector<8x128xf32>
    %cst = arith.constant -1.300000e+00 : f32
    %4 = vector.broadcast %cst : f32 to vector<8x128xf32>
    %5 = arith.mulf %4, %3 : vector<8x128xf32>
    %c1_i32 = arith.constant 1 : i32
    %6 = arith.muli %arg0, %c1_i32 : i32
    %7 = arith.addi %6, %arg1 : i32
    %c8_i32 = arith.constant 8 : i32
    %8 = arith.muli %7, %c8_i32 : i32
    %9 = tpu.iota {dimensions = array<i32: 0>} : vector<8x128xi32>
    %10 = vector.broadcast %8 : i32 to vector<8x128xi32>
    %11 = arith.addi %9, %10 : vector<8x128xi32>
    %12 = tpu.iota {dimensions = array<i32: 1>} : vector<8x128xi32>
    %c128_i32 = arith.constant 128 : i32
    %13 = vector.broadcast %c128_i32 : i32 to vector<8x128xi32>
    %14 = arith.muli %11, %13 : vector<8x128xi32>
    %15 = arith.addi %14, %12 : vector<8x128xi32>
    %c999_i32 = arith.constant 999 : i32
    %16 = vector.broadcast %c999_i32 : i32 to vector<8x128xi32>
    %17 = arith.cmpi slt, %15, %16 : vector<8x128xi32>
    %cst_2 = arith.constant -1.000000e+30 : f32
    %18 = vector.broadcast %cst_2 : f32 to vector<8x128xf32>
    %19 = arith.select %17, %5, %18 : vector<8x128xi1>, vector<8x128xf32>
    %20 = vector.shape_cast %19 : vector<8x128xf32> to vector<1x8x128xf32>
    %cst_3 = arith.constant dense<0xFF800000> : vector<8x128xf32>
    %21 = vector.multi_reduction <maximumf>, %20, %cst_3 [0] : vector<1x8x128xf32> to vector<8x128xf32>
    %c0_4 = arith.constant 0 : index
    %c0_5 = arith.constant 0 : index
    %22 = vector.load %arg4[%c0_4, %c0_5] : memref<8x128xf32, #tpu.memory_space<vmem>>, vector<8x128xf32>
    %23 = arith.maximumf %22, %21 : vector<8x128xf32>
    %c0_6 = arith.constant 0 : index
    %c0_7 = arith.constant 0 : index
    %24 = vector.load %arg5[%c0_6, %c0_7] : memref<8x128xf32, #tpu.memory_space<vmem>>, vector<8x128xf32>
    %25 = arith.subf %22, %23 : vector<8x128xf32>
    %26 = math.exp %25 : vector<8x128xf32>
    %27 = arith.mulf %24, %26 : vector<8x128xf32>
    %28 = vector.shape_cast %23 : vector<8x128xf32> to vector<1x8x128xf32>
    %29 = arith.subf %20, %28 : vector<1x8x128xf32>
    %30 = math.exp %29 : vector<1x8x128xf32>
    %cst_8 = arith.constant dense<0.000000e+00> : vector<8x128xf32>
    %31 = vector.multi_reduction <add>, %30, %cst_8 [0] : vector<1x8x128xf32> to vector<8x128xf32>
    %32 = arith.addf %27, %31 : vector<8x128xf32>
    %c0_9 = arith.constant 0 : index
    %c0_10 = arith.constant 0 : index
    %33 = vector.load %arg5[%c0_9, %c0_10] : memref<8x128xf32, #tpu.memory_space<vmem>>, vector<8x128xf32>
    tpu.vector_store %arg5[%c0_9, %c0_10], %32 {strides = array<i32>} : memref<8x128xf32, #tpu.memory_space<vmem>>, vector<8x128xf32>,
    %c0_11 = arith.constant 0 : index
    %c0_12 = arith.constant 0 : index
    %34 = vector.load %arg4[%c0_11, %c0_12] : memref<8x128xf32, #tpu.memory_space<vmem>>, vector<8x128xf32>
    tpu.vector_store %arg4[%c0_11, %c0_12], %23 {strides = array<i32>} : memref<8x128xf32, #tpu.memory_space<vmem>>, vector<8x128xf32>,
    %c0_i32_13 = arith.constant 0 : i32
    %35 = arith.cmpi eq, %arg1, %c0_i32_13 : i32
    %36 = arith.extui %35 : i1 to i32
    %c0_i32_14 = arith.constant 0 : i32
    %37 = arith.cmpi ne, %36, %c0_i32_14 : i32
    scf.if %37 {
      %c0_15 = arith.constant 0 : index
      %c0_16 = arith.constant 0 : index
      %38 = vector.load %arg4[%c0_15, %c0_16] : memref<8x128xf32, #tpu.memory_space<vmem>>, vector<8x128xf32>
      %c0_17 = arith.constant 0 : index
      %c0_18 = arith.constant 0 : index
      %c0_19 = arith.constant 0 : index
      %c0_20 = arith.constant 0 : index
      %39 = vector.load %arg3[%c0_17, %c0_18, %c0_19, %c0_20] : memref<1x2x8x128xf32, #tpu.memory_space<vmem>>, vector<1x1x8x128xf32>
      %40 = vector.shape_cast %39 : vector<1x1x8x128xf32> to vector<8x128xf32>
      %41 = vector.shape_cast %38 : vector<8x128xf32> to vector<1x1x8x128xf32>
      tpu.vector_store %arg3[%c0_17, %c0_18, %c0_19, %c0_20], %41 {strides = array<i32>} : memref<1x2x8x128xf32, #tpu.memory_space<vmem>>, vector<1x1x8x128xf32>,
      %c0_21 = arith.constant 0 : index
      %c0_22 = arith.constant 0 : index
      %42 = vector.load %arg5[%c0_21, %c0_22] : memref<8x128xf32, #tpu.memory_space<vmem>>, vector<8x128xf32>
      %c0_23 = arith.constant 0 : index
      %c1 = arith.constant 1 : index
      %c0_24 = arith.constant 0 : index
      %c0_25 = arith.constant 0 : index
      %43 = vector.load %arg3[%c0_23, %c1, %c0_24, %c0_25] : memref<1x2x8x128xf32, #tpu.memory_space<vmem>>, vector<1x1x8x128xf32>
      %44 = vector.shape_cast %43 : vector<1x1x8x128xf32> to vector<8x128xf32>
      %45 = vector.shape_cast %42 : vector<8x128xf32> to vector<1x1x8x128xf32>
      tpu.vector_store %arg3[%c0_23, %c1, %c0_24, %c0_25], %45 {strides = array<i32>} : memref<1x2x8x128xf32, #tpu.memory_space<vmem>>, vector<1x1x8x128xf32>,
    } else {
    }
    return
  }
  func.func @transform_0(%arg0: i32, %arg1: i32) -> (i32, i32) {
    %c1_i32 = arith.constant 1 : i32
    %0 = arith.muli %arg0, %c1_i32 : i32
    %1 = arith.addi %0, %arg1 : i32
    %c0_i32 = arith.constant 0 : i32
    %c0_i32_0 = arith.constant 0 : i32
    return %1, %c0_i32 : i32, i32
  }
  func.func @transform_1(%arg0: i32, %arg1: i32) -> (i32, i32, i32, i32) {
    %c0_i32 = arith.constant 0 : i32
    %c0_i32_0 = arith.constant 0 : i32
    %c0_i32_1 = arith.constant 0 : i32
    %c0_i32_2 = arith.constant 0 : i32
    return %arg0, %c0_i32, %c0_i32_0, %c0_i32_1 : i32, i32, i32, i32
  }
}

</mosaic_0001>

<llo_original>
// kernel: tpu_custom_call.1
$region0: #{tpu_custom_call.1}
  #allocation0 [shape = 'u32[]', space=smem, size = 0x4, offset = 0x4, fixed_abs, tag = 'smem constant byte address 0x4 - core index']
  #allocation1 [shape = 'u32[144,128]{1,0:T(1,128)}', space=vmem, size = 0x12000, scoped, tag = 'internal scratch']
  #allocation2 [shape = 'f32[8,128]{1,0:T(8,128)}', space=vmem, size = 0x1000, scoped, tag = 'scratch operand']
  #allocation3 [shape = 'f32[8,128]{1,0:T(8,128)}', space=vmem, size = 0x1000, scoped, tag = 'scratch operand']
  %s0 = inlined_call_operand.hbm [shape: f32[16,128], index: 0, kind: input, shape index: {}]
  %s1 = inlined_call_operand.hbm [shape: f32[2,2,8,128], index: 1, kind: output, shape index: {}]
  %s2 = sld [smem:[#allocation0]]
  $region49: #{tpu_custom_call.1} parent=0
    _
  %s4 = ssub.s32 1, %s2
  %s5 = scalar_select 0, %s4, %s2
  $region1: #{tpu_custom_call.1} parent=0
    #allocation4 [shape = 'u8[8192]{0}', space=vmem, size = 0x2000, scoped, tag = 'input window, operand 0']
    #allocation5 [shape = 's32[2]{0}', space=sflag, size = 0x8, scoped, tag = 'scoped memory for tpu_custom_call.1']
    #allocation6 [shape = 's32[2]{0}', space=sflag, size = 0x8, scoped, tag = 'scoped memory for tpu_custom_call.1']
    #allocation7 [shape = 'u8[16384]{0}', space=vmem, size = 0x4000, scoped, tag = 'output window, operand 0']
    %6 = vsyncpa [#allocation5], 0
    %s7 = scalar_lea.sflag [#allocation5], 1
    %8 = vsyncpa %s7, 0
    %9 = vsyncpa [#allocation6], 0
    %s10 = scalar_lea.sflag [#allocation6], 1
    %11 = vsyncpa %s10, 0
    loop: start=0, step=1, limit=4
    $region2: #{tpu_custom_call.1} parent=1 // loop_pre_header
      _
    $region3: #{tpu_custom_call.1} parent=1 // loop_header
      %s13 = sphi 0, %s17
      %p14 = scmp.ge.s32.totalorder %s13, 4
      %s20 = sphi 0, %s32
      %s21 = sphi 0, %s28
      %s22 = sphi 0, %s20
      %s23 = sphi 0, %s21
      %s24 = sphi 0, %s22
      %s25 = sphi 0, %s23
      %s37 = sphi 0, %s39
      %s40 = sphi 0, %s37
      %s41 = sphi 0, %s40
      %s57 = sphi 0, %s41
      %s63 = sphi 0, %s65
      %s66 = sphi 0, %s63
      %s67 = sphi 0, %s66
      %s83 = sphi 0, %s67
    $region4: #{tpu_custom_call.1} parent=1 // loop_header_branch
      %16 = sbr.rel (%p14) target = $region8
    $region5: #{tpu_custom_call.1} parent=1 // loop_body
      %s18 = ssub.s32 %s13, 1
      %s19 = ssub.s32 %s13, 2
      %s26 = sadd.s32 1, %s21
      %p27 = scmp.ge.s32.totalorder %s26, 1
      %s28 = scalar_select %p27, 0, %s26
      %s29 = sadd.s32 1, %s20
      %s30 = scalar_select %p27, %s29, %s20
      %p31 = scmp.ge.s32.totalorder %s30, 2
      %s32 = scalar_select %p31, 0, %s30
      %s33 = sadd.s32 %s20, %s21
      %s34 = sadd.s32 %s32, %s28
      %s35 = ssub.s32 %s33, %s34
      %p36 = scmp.eq.s32.totalorder %s35, 0
      %s38 = sadd.s32 %s37, 1
      %s39 = scalar_select %p36, %s37, %s38
      %p42 = pneg %p36
      %p43 = scmp.eq.s32.totalorder %s13, 1
      %p44 = por %p42, %p43
      %p45 = scmp.ne.s32.totalorder %s37, %s40
      %p46 = scmp.eq.s32.totalorder %s13, 0
      %p47 = por %p45, %p46
      %p48 = scmp.ne.s32.totalorder %s37, %s40
      %p49 = scmp.eq.s32.totalorder %s18, 1
      %p50 = por %p48, %p49
      %p51 = scmp.ne.s32.totalorder %s40, %s41
      %p52 = scmp.eq.s32.totalorder %s18, 0
      %p53 = por %p51, %p52
      %p54 = scmp.ne.s32.totalorder %s40, %s41
      %p55 = scmp.eq.s32.totalorder %s19, 1
      %p56 = por %p54, %p55
      %p58 = scmp.ne.s32.totalorder %s41, %s57
      %p59 = scmp.eq.s32.totalorder %s19, 0
      %p60 = por %p58, %p59
      %s61 = ssub.s32 %s20, %s32
      %p62 = scmp.eq.s32.totalorder %s61, 0
      %s64 = sadd.s32 %s63, 1
      %s65 = scalar_select %p62, %s63, %s64
      %p68 = pneg %p62
      %p69 = scmp.eq.s32.totalorder %s13, 1
      %p70 = por %p68, %p69
      %p71 = scmp.ne.s32.totalorder %s63, %s66
      %p72 = scmp.eq.s32.totalorder %s13, 0
      %p73 = por %p71, %p72
      %p74 = scmp.ne.s32.totalorder %s63, %s66
      %p75 = scmp.eq.s32.totalorder %s18, 1
      %p76 = por %p74, %p75
      %p77 = scmp.ne.s32.totalorder %s66, %s67
      %p78 = scmp.eq.s32.totalorder %s18, 0
      %p79 = por %p77, %p78
      %p80 = scmp.ne.s32.totalorder %s66, %s67
      %p81 = scmp.eq.s32.totalorder %s19, 1
      %p82 = por %p80, %p81
      %p84 = scmp.ne.s32.totalorder %s67, %s83
      %p85 = scmp.eq.s32.totalorder %s19, 0
      %p86 = por %p84, %p85
      %p87 = scmp.le.s32.totalorder 1, %s13
      %p88 = scmp.lt.s32.totalorder %s13, 3
      %p89 = pnand %p87, %p88
      %p90 = pneg %p89
      // Predicated region
      $region9: #{tpu_custom_call.1} parent=5 // pred_check
        _
      $region10: #{tpu_custom_call.1} parent=5 // pred_check_branch
        %92 = sbr.rel (%p89) target = $region12
      $region11: #{tpu_custom_call.1} parent=5 // pred_region
        %s93 = ssub.s32 %s13, 1
      $region12: #{tpu_custom_call.1} parent=5 // pred_fallthru
        _
      %p94 = scmp.lt.s32.totalorder %s13, 2
      // Predicated region
      $region13: #{tpu_custom_call.1} parent=5 // pred_check
        %p95 = pneg %p94
      $region14: #{tpu_custom_call.1} parent=5 // pred_check_branch
        %97 = sbr.rel (%p95) target = $region16
      $region15: #{tpu_custom_call.1} parent=5 // pred_region
        // Predicated region
        $region17: #{tpu_custom_call.1} parent=15 // pred_check
          %p98 = pneg %p47
        $region18: #{tpu_custom_call.1} parent=15 // pred_check_branch
          %100 = sbr.rel (%p98) target = $region20
        $region19: #{tpu_custom_call.1} parent=15 // pred_region
          %s101 = sand.u32 %s37, 1
          %s102 = scalar_lea.sflag [#allocation5], %s101
          %s103 = sand.u32 %s37, 1
          %s104 = smul.addr %s103, 8
          %s105 = scalar_lea.vmem [#allocation4], %s104
          %s106 = sadd.s32 %s20, %s21
          %s108 = ssub.s32 128, 128
          %109 = vsyncadd %s102, %s108
          %s110 = smul.addr %s106, 128
          %s111 = scalar_lea.hbm %s0, %s110
          %s113 = sshll.u32 %s105, 4
          %s114 = int_to_ptr.vmem [resolvable:$true] %s113
          %116 = dma.hbm_to_vmem [thread:$0]  %s111, 128, %s114, %s102
        $region20: #{tpu_custom_call.1} parent=15 // pred_fallthru
          _
      $region16: #{tpu_custom_call.1} parent=5 // pred_fallthru
        _
      %p117 = scmp.le.s32.totalorder 1, %s13
      %p118 = scmp.lt.s32.totalorder %s13, 3
      %p119 = pnand %p117, %p118
      %p120 = pneg %p119
      // Predicated region
      $region21: #{tpu_custom_call.1} parent=5 // pred_check
        _
      $region22: #{tpu_custom_call.1} parent=5 // pred_check_branch
        %122 = sbr.rel (%p119) target = $region24
      $region23: #{tpu_custom_call.1} parent=5 // pred_region
        %s123 = ssub.s32 %s13, 1
        %s124 = sand.u32 %s40, 1
        %s125 = scalar_lea.sflag [#allocation5], %s124
        %s126 = sand.u32 %s40, 1
        %s127 = smul.addr %s126, 8
        %s128 = scalar_lea.vmem [#allocation4], %s127
        // Predicated region
        $region25: #{tpu_custom_call.1} parent=23 // pred_check
          %p129 = pneg %p53
        $region26: #{tpu_custom_call.1} parent=23 // pred_check_branch
          %131 = sbr.rel (%p129) target = $region28
        $region27: #{tpu_custom_call.1} parent=23 // pred_region
          %132 = dma.done %s125, 128
        $region28: #{tpu_custom_call.1} parent=23 // pred_fallthru
          _
        %s133 = sand.u32 %s40, 1
        %s134 = scalar_lea.sflag [#allocation5], %s133
        %s135 = sand.u32 %s40, 1
        %s136 = smul.addr %s135, 8
        %s137 = scalar_lea.vmem [#allocation4], %s136
        %p138 = pneg %p53
        %p139 = pneg %p50
        %p140 = pneg %p79
        %p141 = pneg %p76
        %s142 = sand.u32 %s66, 1
        %s143 = scalar_lea.sflag [#allocation6], %s142
        %s144 = sand.u32 %s66, 1
        %s145 = smul.addr %s144, 16
        %s146 = scalar_lea.vmem [#allocation7], %s145
        %s147 = sadd.s32 %s22, %s23
        %p148 = scmp.eq.s32.totalorder %s23, 0
        // Predicated region
        $region29: #{tpu_custom_call.1} parent=23 // pred_check
          %p149 = pneg %p148
        $region30: #{tpu_custom_call.1} parent=23 // pred_check_branch
          %151 = sbr.rel (%p149) target = $region32
        $region31: #{tpu_custom_call.1} parent=23 // pred_region
          %152 = vst [vmem:[#allocation2] sm:$0xff] -1e+30
          %153 = vst [vmem:[#allocation3] sm:$0xff] 0.0
        $region32: #{tpu_custom_call.1} parent=23 // pred_fallthru
          _
        %v154 = vld [vmem:[%s128] sm:$0xff]
        %v155 = vmul.f32 %v154, -1.3
        %s156 = sadd.s32 %s22, %s23
        %s157 = smul.u32 %s156, 8
        %v158 = vlaneseq
        %v159 = vshrl.u32 %v158, 7
        %v160 = vstv %s157
        %v161 = vadd.s32 %v159, %v160
        %v162 = vlaneseq
        %v163 = vand.u32 %v162, 127
        %v164 = vmul.u32 %v161, 128
        %v165 = vadd.s32 %v164, %v163
        %vm166 = vcmp.lt.s32.totalorder %v165, 999
        %v167 = vsel %vm166, %v155, -1e+30
        %v168 = vld [vmem:[#allocation2] sm:$0xff]
        %v169 = vmax.f32 %v168, %v167
        %v170 = vld [vmem:[#allocation3] sm:$0xff]
        %v171 = vsub.f32 %v168, %v169
        %v172 = vmul.f32 %v171, 1.442695
        %v173 = vpow.pop %v172
        %v174 = vmul.f32 %v170, %v173
        %v175 = vsub.f32 %v167, %v169
        %v176 = vmul.f32 %v175, 1.442695
        %v177 = vpow.pop %v176
        %v178 = vadd.f32 %v177, 0.0
        %v179 = vadd.f32 %v174, %v178
        %180 = vst [vmem:[#allocation3] sm:$0xff] %v179
        %181 = vst [vmem:[#allocation2] sm:$0xff] %v169
        // Predicated region
        $region33: #{tpu_custom_call.1} parent=23 // pred_check
          %p182 = pneg %p148
        $region34: #{tpu_custom_call.1} parent=23 // pred_check_branch
          %184 = sbr.rel (%p182) target = $region36
        $region35: #{tpu_custom_call.1} parent=23 // pred_region
          %v185 = vld [vmem:[#allocation2] sm:$0xff]
          %186 = vst [vmem:[%s146] sm:$0xff] %v185
          %v187 = vld [vmem:[#allocation3] sm:$0xff]
          %s188 = scalar_lea.vmem %s146, 8 [#allocation7]
          %189 = vst [vmem:[%s188] sm:$0xff] %v187
        $region36: #{tpu_custom_call.1} parent=23 // pred_fallthru
          _
        %s190 = sand.u32 %s66, 1
        %s191 = scalar_lea.sflag [#allocation6], %s190
        %s192 = sand.u32 %s66, 1
        %s193 = smul.addr %s192, 16
        %s194 = scalar_lea.vmem [#allocation7], %s193
        // Predicated region
        $region37: #{tpu_custom_call.1} parent=23 // pred_check
          %p195 = pneg %p76
        $region38: #{tpu_custom_call.1} parent=23 // pred_check_branch
          %197 = sbr.rel (%p195) target = $region40
        $region39: #{tpu_custom_call.1} parent=23 // pred_region
          %s199 = ssub.s32 256, 256
          %200 = vsyncadd %s191, %s199
          %s201 = smul.addr %s22, 2
          %s202 = smul.addr %s201, 128
          %s203 = scalar_lea.hbm %s1, %s202
          %s204 = sshll.u32 %s194, 4
          %s205 = int_to_ptr.vmem [resolvable:$true] %s204
          %210 = dma.vmem_to_hbm [thread:$0]  %s205, 256, %s203, %s191, 128, 128, 8
        $region40: #{tpu_custom_call.1} parent=23 // pred_fallthru
          _
      $region24: #{tpu_custom_call.1} parent=5 // pred_fallthru
        _
      %p211 = scmp.le.s32.totalorder 2, %s13
      // Predicated region
      $region41: #{tpu_custom_call.1} parent=5 // pred_check
        %p212 = pneg %p211
      $region42: #{tpu_custom_call.1} parent=5 // pred_check_branch
        %214 = sbr.rel (%p212) target = $region44
      $region43: #{tpu_custom_call.1} parent=5 // pred_region
        %s215 = ssub.s32 %s13, 2
        // Predicated region
        $region45: #{tpu_custom_call.1} parent=43 // pred_check
          %p216 = pneg %p82
        $region46: #{tpu_custom_call.1} parent=43 // pred_check_branch
          %218 = sbr.rel (%p216) target = $region48
        $region47: #{tpu_custom_call.1} parent=43 // pred_region
          %s219 = sand.u32 %s67, 1
          %s220 = scalar_lea.sflag [#allocation6], %s219
          %s221 = sand.u32 %s67, 1
          %s222 = smul.addr %s221, 16
          %s223 = scalar_lea.vmem [#allocation7], %s222
          %224 = dma.done %s220, 256
        $region48: #{tpu_custom_call.1} parent=43 // pred_fallthru
          _
      $region44: #{tpu_custom_call.1} parent=5 // pred_fallthru
        _
    $region6: #{tpu_custom_call.1} parent=1 // loop_footer
      %s17 = sadd.s32 1, %s13
    $region7: #{tpu_custom_call.1} parent=1 // loop_footer_branch
      %12 = sbr.rel target = $region3
    $region8: #{tpu_custom_call.1} parent=1 // loop_exit
      _
    %225 = vsyncpa [#allocation5], 1
    %s226 = scalar_lea.sflag [#allocation5], 1
    %227 = vsyncpa %s226, 1
    %228 = vsyncpa [#allocation6], 1
    %s229 = scalar_lea.sflag [#allocation6], 1
    %230 = vsyncpa %s229, 1

</llo_original>
